<compile_context>
chip_gen: v7x
topology: tpu7x:2x2x1
jax: 0.10.0
libtpu: 0.0.40
codegen_flags: <defaults>
</compile_context>

<pallas_src>
import functools
import math

import jax
import jax.numpy as jnp
from jax import lax
from jax.experimental import pallas as pl
from jax.experimental.pallas import tpu as pltpu


def _time_encoder_kernel(t_ref, a_ref, o_ref):
    # t_ref: (blk, pack+1) f32, last column == 1.0 (bias column)
    # a_ref: (pack+1, lanes) f32 folded affine (per-lane weight + bias row)
    # o_ref: (blk, lanes) f32, lanes = pack*C (multiple of 128 -> unmasked vst)
    z = jnp.dot(
        t_ref[...], a_ref[...],
        precision=lax.Precision.HIGHEST,          # 6-pass f32 emulation
        preferred_element_type=jnp.float32,
    )
    o_ref[...] = jnp.cos(z)                        # VPU/EUP; lane-dense store


def _round_up(x, m):
    return (x + m - 1) // m * m


def _round_down(x, m):
    return x // m * m


@functools.partial(jax.jit, static_argnames=("block_rows", "min_grid_steps"))
def time_encoder(t, weight, bias, *, block_rows=8192, min_grid_steps=4):
    """Pallas equivalent of TimeEncoder.forward.

    Args:
      t:              any-shaped float array (flattened like t.view(-1, 1)).
      weight:         (C, 1) Linear weight (PyTorch convention).
      bias:           (C,)   Linear bias.
      block_rows:     max packed rows per tile (each packed row = `pack` steps).
      min_grid_steps: lower bound on grid length so v7x can shard across both
                      TensorCores.
    Returns:
      (N, C) float32 array, N = t.size.

    Note: for a zero-copy epilogue, make N a multiple of
    pack = 128 // gcd(C, 128)  (= 4 for C = 32).  Otherwise a single
    full-output slice copy is incurred after the kernel.
    """
    c = int(weight.shape[0])
    t_flat = t.reshape(-1).astype(jnp.float32)
    n = t_flat.shape[0]

    # Lane-dense packing: fold `pack` consecutive C-wide output rows into one
    # row of `lanes` = pack*C = lcm(C, 128) lanes (always a multiple of 128).
    pack = 128 // math.gcd(c, 128)
    lanes = pack * c
    if lanes > 4096:
        # TODO(synk): pack=1 fallback for pathological C (e.g. large primes)
        # reintroduces masked (<128-lane) partial stores.
        pack, lanes = 1, c

    n_rows = pl.cdiv(n, pack)
    n_pad = n_rows * pack
    if n_pad != n:
        t_flat = jnp.pad(t_flat, (0, n_pad - n))
    t2 = t_flat.reshape(n_rows, pack)
    # Augment with a ones column so the bias rides through the same matmul.
    t_aug = jnp.concatenate(
        [t2, jnp.ones((n_rows, 1), jnp.float32)], axis=1)          # (R, pack+1)

    # Folded affine matrix A: A[p, p*C+c] = W[c];  A[pack, p*C+c] = b[c].
    w = weight.reshape(-1).astype(jnp.float32)                      # (C,)
    b = bias.reshape(-1).astype(jnp.float32)                        # (C,)
    eye = jnp.eye(pack, dtype=jnp.float32)                          # (P, P)
    a_w = (eye[:, :, None] * w[None, None, :]).reshape(pack, lanes)  # (P, L)
    a_b = jnp.tile(b[None, :], (1, pack))                           # (1, L)
    a_mat = jnp.concatenate([a_w, a_b], axis=0)                     # (P+1, L)

    # Tile sizing from an explicit VMEM byte budget (double-buffered in+out;
    # the (blk, pack+1) t tile is lane-padded to 128 lanes in VMEM).
    tile_budget = 20 << 20                       # of the 32 MiB scoped limit
    bytes_per_row = 2 * 4 * _round_up(pack + 1, 128) + 2 * 4 * lanes
    budget_rows = max(8, tile_budget // bytes_per_row)

    if n_rows <= 8:
        blk = n_rows                             # single tile, full extent
    else:
        blk = min(block_rows, budget_rows, n_rows,
                  _round_up(pl.cdiv(n_rows, min_grid_steps), 8))
        blk = max(8, _round_down(blk, 8))
    grid = (pl.cdiv(n_rows, blk),)

    out_packed = pl.pallas_call(
        _time_encoder_kernel,
        out_shape=jax.ShapeDtypeStruct((n_rows, lanes), jnp.float32),
        grid_spec=pltpu.PrefetchScalarGridSpec(
            num_scalar_prefetch=0,
            grid=grid,
            in_specs=[
                pl.BlockSpec((blk, pack + 1), lambda i: (i, 0)),     # t_aug
                pl.BlockSpec((pack + 1, lanes), lambda i: (0, 0)),   # A (resident)
            ],
            out_specs=pl.BlockSpec((blk, lanes), lambda i: (i, 0)),
        ),
        compiler_params=pltpu.CompilerParams(
            dimension_semantics=("parallel",),        # v7x: shard over 2 TCs
            vmem_limit_bytes=32 * 1024 * 1024,        # <= physical on v5e/v6e/v7x
        ),
        cost_estimate=pl.CostEstimate(
            flops=2 * n_rows * (pack + 1) * lanes,
            transcendentals=n_rows * lanes,
            bytes_accessed=4 * (n_rows * (pack + 1)
                                + (pack + 1) * lanes
                                + n_rows * lanes),
        ),
    )(t_aug, a_mat)

    # Free, contiguous row-major view back to the PyTorch (N, C) layout.
    out = out_packed.reshape(n_pad, c)
    if n_pad != n:
        # Only when N % pack != 0: one full-output slice copy (see docstring).
        out = out[:n]
    return out


if __name__ == "__main__":
    out_channels = 32
    key = jax.random.PRNGKey(0)
    k_t, k_w, k_b = jax.random.split(key, 3)

    # deterministic synthetic parameters (shapes follow nn.Linear(1, C))
    weight = jax.random.uniform(k_w, (out_channels, 1), jnp.float32,
                                minval=-1.0, maxval=1.0)
    bias = jax.random.uniform(k_b, (out_channels,), jnp.float32,
                              minval=-1.0, maxval=1.0)

    # N = 128 is a multiple of pack = 128 // gcd(32, 128) = 4 -> zero-copy epilogue.
    t = jax.random.uniform(k_t, (2, 64), jnp.float32, minval=0.0, maxval=10.0)

    out = time_encoder(t, weight, bias)
    jax.block_until_ready(out)

    ref = jnp.cos(t.reshape(-1, 1) * weight.reshape(1, -1) + bias[None, :])
    assert out.shape == (t.size, out_channels)
    assert jnp.allclose(out, ref, atol=1e-4, rtol=1e-4), \
        float(jnp.max(jnp.abs(out - ref)))

    # Moderate-magnitude timestamps (and a ragged N % pack != 0 tail): checks
    # that the folded MXU affine keeps enough of t's mantissa for the phase.
    t_big = jax.random.uniform(k_t, (3, 171), jnp.float32,
                               minval=0.0, maxval=1.0e3)
    out_big = time_encoder(t_big, weight, bias)
    jax.block_until_ready(out_big)
    ref_big = jnp.cos(t_big.reshape(-1, 1) * weight.reshape(1, -1) + bias[None, :])
    assert out_big.shape == (t_big.size, out_channels)
    assert jnp.allclose(out_big, ref_big, atol=2e-2, rtol=2e-2), \
        float(jnp.max(jnp.abs(out_big - ref_big)))

    print("KERNEL_OK")
</pallas_src>

<mosaic_0001>
module attributes {stable_mosaic.version = 11 : i64} {
  func.func @_time_encoder_kernel(%arg0: i32, %arg1: memref<8x5xf32, #tpu.memory_space<vmem>>, %arg2: memref<5x128xf32, #tpu.memory_space<vmem>>, %arg3: memref<8x128xf32, #tpu.memory_space<vmem>>) attributes {dimension_semantics = [#tpu.dimension_semantics<parallel>], iteration_bounds = array<i64: 4>, scalar_prefetch = 0 : i64, scratch_operands = 0 : i64, tpu.core_type = #tpu.core_type<tc>, window_params = [{transform_indices = @transform_0, window_bounds = array<i64: 8, 5>}, {pipeline_mode = #tpu.pipeline_mode<synchronous>, transform_indices = @transform_1, window_bounds = array<i64: 5, 128>}, {transform_indices = @transform_2, window_bounds = array<i64: 8, 128>}]} {
    %c0 = arith.constant 0 : index
    %c0_0 = arith.constant 0 : index
    %0 = vector.load %arg1[%c0, %c0_0] : memref<8x5xf32, #tpu.memory_space<vmem>>, vector<8x5xf32>
    %c0_1 = arith.constant 0 : index
    %c0_2 = arith.constant 0 : index
    %1 = vector.load %arg2[%c0_1, %c0_2] : memref<5x128xf32, #tpu.memory_space<vmem>>, vector<5x128xf32>
    %cst = arith.constant dense<0.000000e+00> : vector<8x128xf32>
    %2 = tpu.matmul %0, %1, %cst {dimension_numbers = #tpu.dot_dimension_numbers<[1], [0], [0], [1], [0, 0, 1, 1], [], []>, precision = #tpu.contract_precision<fp32>} : vector<8x5xf32>, vector<5x128xf32>, vector<8x128xf32> -> vector<8x128xf32>
    %3 = math.cos %2 : vector<8x128xf32>
    %c0_3 = arith.constant 0 : index
    %c0_4 = arith.constant 0 : index
    %4 = vector.load %arg3[%c0_3, %c0_4] : memref<8x128xf32, #tpu.memory_space<vmem>>, vector<8x128xf32>
    tpu.vector_store %arg3[%c0_3, %c0_4], %3 {strides = array<i32>} : memref<8x128xf32, #tpu.memory_space<vmem>>, vector<8x128xf32>,
    return
  }
  func.func @transform_0(%arg0: i32) -> (i32, i32) {
    %c0_i32 = arith.constant 0 : i32
    %c0_i32_0 = arith.constant 0 : i32
    return %arg0, %c0_i32 : i32, i32
  }
  func.func @transform_1(%arg0: i32) -> (i32, i32) {
    %c0_i32 = arith.constant 0 : i32
    %c0_i32_0 = arith.constant 0 : i32
    %c0_i32_1 = arith.constant 0 : i32
    return %c0_i32, %c0_i32_0 : i32, i32
  }
  func.func @transform_2(%arg0: i32) -> (i32, i32) {
    %c0_i32 = arith.constant 0 : i32
    %c0_i32_0 = arith.constant 0 : i32
    return %arg0, %c0_i32 : i32, i32
  }
}

</mosaic_0001>

<llo_original>
// kernel: time_encoder.1
$region0: #{time_encoder.1}
  #allocation0 [shape = 'u32[]', space=smem, size = 0x4, offset = 0x4, fixed_abs, tag = 'smem constant byte address 0x4 - core index']
  #allocation1 [shape = 'u32[144,128]{1,0:T(1,128)}', space=vmem, size = 0x12000, scoped, tag = 'internal scratch']
  %s0 = inlined_call_operand.vmem [shape: f32[32,5], index: 0, kind: input, shape index: {}]
  %s1 = inlined_call_operand.vmem [shape: f32[5,128], index: 1, kind: input, shape index: {}]
  %s2 = inlined_call_operand.vmem [shape: f32[32,128], index: 2, kind: output, shape index: {}]
  %s3 = sld [smem:[#allocation0]]
  $region41: #{time_encoder.1} parent=0
    _
  %s5 = ssub.s32 1, %s3
  %s6 = scalar_select 0, %s5, %s3
  loop: start=0, step=1, limit=6
  $region2: #{time_encoder.1} parent=0 // loop_pre_header
    _
  $region3: #{time_encoder.1} parent=0 // loop_header
    %s8 = sphi 0, %s12
    %p9 = scmp.ge.s32.totalorder %s8, 6
    %s18 = sphi 0, %s20
    %s21 = sphi 0, %s18
    %s22 = sphi 0, %s21
    %s38 = sphi 0, %s22
    %s42 = sphi 0, %s42
    %s44 = sphi 0, %s42
    %s45 = sphi 0, %s44
    %s59 = sphi 0, %s45
    %s65 = sphi 0, %s67
    %s68 = sphi 0, %s65
    %s69 = sphi 0, %s68
    %s85 = sphi 0, %s69
  $region4: #{time_encoder.1} parent=0 // loop_header_branch
    %11 = sbr.rel (%p9) target = $region8
  $region5: #{time_encoder.1} parent=0 // loop_body
    %s13 = ssub.s32 %s8, 1
    %s14 = ssub.s32 %s8, 2
    %s15 = sadd.s32 %s8, 1
    %s16 = ssub.s32 %s8, %s15
    %p17 = scmp.eq.s32.totalorder %s16, 0
    %s19 = sadd.s32 %s18, 1
    %s20 = scalar_select %p17, %s18, %s19
    %p23 = pneg %p17
    %p24 = scmp.eq.s32.totalorder %s8, 3
    %p25 = por %p23, %p24
    %p26 = scmp.ne.s32.totalorder %s18, %s21
    %p27 = scmp.eq.s32.totalorder %s8, 0
    %p28 = por %p26, %p27
    %p29 = scmp.ne.s32.totalorder %s18, %s21
    %p30 = scmp.eq.s32.totalorder %s13, 3
    %p31 = por %p29, %p30
    %p32 = scmp.ne.s32.totalorder %s21, %s22
    %p33 = scmp.eq.s32.totalorder %s13, 0
    %p34 = por %p32, %p33
    %p35 = scmp.ne.s32.totalorder %s21, %s22
    %p36 = scmp.eq.s32.totalorder %s14, 3
    %p37 = por %p35, %p36
    %p39 = scmp.ne.s32.totalorder %s22, %s38
    %p40 = scmp.eq.s32.totalorder %s14, 0
    %p41 = por %p39, %p40
    %s43 = sadd.s32 %s42, 1
    %p46 = scmp.eq.s32.totalorder %s8, 3
    %p47 = scmp.ne.s32.totalorder %s42, %s44
    %p48 = scmp.eq.s32.totalorder %s8, 0
    %p49 = por %p47, %p48
    %p50 = scmp.ne.s32.totalorder %s42, %s44
    %p51 = scmp.eq.s32.totalorder %s13, 3
    %p52 = por %p50, %p51
    %p53 = scmp.ne.s32.totalorder %s44, %s45
    %p54 = scmp.eq.s32.totalorder %s13, 0
    %p55 = por %p53, %p54
    %p56 = scmp.ne.s32.totalorder %s44, %s45
    %p57 = scmp.eq.s32.totalorder %s14, 3
    %p58 = por %p56, %p57
    %p60 = scmp.ne.s32.totalorder %s45, %s59
    %p61 = scmp.eq.s32.totalorder %s14, 0
    %p62 = por %p60, %p61
    %s63 = ssub.s32 %s8, %s15
    %p64 = scmp.eq.s32.totalorder %s63, 0
    %s66 = sadd.s32 %s65, 1
    %s67 = scalar_select %p64, %s65, %s66
    %p70 = pneg %p64
    %p71 = scmp.eq.s32.totalorder %s8, 3
    %p72 = por %p70, %p71
    %p73 = scmp.ne.s32.totalorder %s65, %s68
    %p74 = scmp.eq.s32.totalorder %s8, 0
    %p75 = por %p73, %p74
    %p76 = scmp.ne.s32.totalorder %s65, %s68
    %p77 = scmp.eq.s32.totalorder %s13, 3
    %p78 = por %p76, %p77
    %p79 = scmp.ne.s32.totalorder %s68, %s69
    %p80 = scmp.eq.s32.totalorder %s13, 0
    %p81 = por %p79, %p80
    %p82 = scmp.ne.s32.totalorder %s68, %s69
    %p83 = scmp.eq.s32.totalorder %s14, 3
    %p84 = por %p82, %p83
    %p86 = scmp.ne.s32.totalorder %s69, %s85
    %p87 = scmp.eq.s32.totalorder %s14, 0
    %p88 = por %p86, %p87
    %p89 = scmp.le.s32.totalorder 1, %s8
    %p90 = scmp.lt.s32.totalorder %s8, 5
    %p91 = pnand %p89, %p90
    %p92 = pneg %p91
    // Predicated region
    $region9: #{time_encoder.1} parent=5 // pred_check
      _
    $region10: #{time_encoder.1} parent=5 // pred_check_branch
      %94 = sbr.rel (%p91) target = $region12
    $region11: #{time_encoder.1} parent=5 // pred_region
      %s95 = ssub.s32 %s8, 1
      // Predicated region
      $region13: #{time_encoder.1} parent=11 // pred_check
        %p96 = pneg %p55
      $region14: #{time_encoder.1} parent=11 // pred_check_branch
        %98 = sbr.rel (%p96) target = $region16
      $region15: #{time_encoder.1} parent=11 // pred_region
        _
      $region16: #{time_encoder.1} parent=11 // pred_fallthru
        _
    $region12: #{time_encoder.1} parent=5 // pred_fallthru
      _
    %p99 = scmp.lt.s32.totalorder %s8, 4
    // Predicated region
    $region17: #{time_encoder.1} parent=5 // pred_check
      %p100 = pneg %p99
    $region18: #{time_encoder.1} parent=5 // pred_check_branch
      %102 = sbr.rel (%p100) target = $region20
    $region19: #{time_encoder.1} parent=5 // pred_region
      // Predicated region
      $region21: #{time_encoder.1} parent=19 // pred_check
        %p103 = pneg %p28
      $region22: #{time_encoder.1} parent=19 // pred_check_branch
        %105 = sbr.rel (%p103) target = $region24
      $region23: #{time_encoder.1} parent=19 // pred_region
        %p106 = scmp.lt.s32.totalorder %s8, 3
        %s107 = scalar_select %p106, %s8, 3
        %s108 = smul.addr %s107, 8
        %s109 = scalar_lea.vmem %s0, %s108
      $region24: #{time_encoder.1} parent=19 // pred_fallthru
        _
    $region20: #{time_encoder.1} parent=5 // pred_fallthru
      _
    %p110 = scmp.le.s32.totalorder 1, %s8
    %p111 = scmp.lt.s32.totalorder %s8, 5
    %p112 = pnand %p110, %p111
    %p113 = pneg %p112
    // Predicated region
    $region25: #{time_encoder.1} parent=5 // pred_check
      _
    $region26: #{time_encoder.1} parent=5 // pred_check_branch
      %115 = sbr.rel (%p112) target = $region28
    $region27: #{time_encoder.1} parent=5 // pred_region
      %s116 = ssub.s32 %s8, 1
      %p117 = scmp.lt.s32.totalorder %s13, 3
      %s118 = scalar_select %p117, %s13, 3
      %s119 = smul.addr %s118, 8
      %s120 = scalar_lea.vmem %s0, %s119
      %p121 = pneg %p34
      %p122 = pneg %p31
      %p123 = pneg %p55
      %p124 = pneg %p52
      %p125 = pneg %p81
      %p126 = pneg %p78
      %p127 = scmp.lt.s32.totalorder %s13, 3
      %s128 = scalar_select %p127, %s13, 3
      %s129 = smul.addr %s128, 8
      %s130 = scalar_lea.vmem %s2, %s129
      %p131 = scmp.lt.s32.totalorder %s13, 3
      %s132 = scalar_select %p131, %s13, 3
      %s133 = smul.addr %s132, 8
      %s134 = scalar_lea.vmem %s0, %s133
      %p135 = scmp.lt.s32.totalorder %s13, 3
      %s136 = scalar_select %p135, %s13, 3
      %s137 = smul.addr %s136, 8
      %s138 = scalar_lea.vmem %s2, %s137
      %v139 = vld [vmem:[%s134] sm:$0xff]
      %v140 = vld [vmem:[%s1] sm:$0x1f]
      %vm141 = vcmask 39936
      %v143 = vsel %vm141, %v139, 0
      %vm145 = vcmask 1044480
      %v147 = vsel %vm145, %v140, 0
      %149 = vmatprep.subr.mxu0 0.0
      %v150 = vand.u32 %v147, 4294901760
      %151 = vmatpush1.msra.mxu0 %v150
      %152 = vmatprep.subr.mxu0 0.0
      %153 = vmatpush1.msra.mxu0 0.0
      %154 = vmatprep.subr.mxu0 0.0
      %155 = vmatpush1.msra.mxu0 0.0
      %156 = vmatprep.subr.mxu0 0.0
      %157 = vmatpush1.msra.mxu0 0.0
      %158 = vmatprep.subr.mxu0 0.0
      %159 = vmatpush1.msra.mxu0 0.0
      %160 = vmatprep.subr.mxu0 0.0
      %161 = vmatpush1.msra.mxu0 0.0
      %162 = vmatprep.subr.mxu0 0.0
      %163 = vmatpush1.msra.mxu0 0.0
      %164 = vmatprep.subr.mxu0 0.0
      %165 = vmatpush1.msra.mxu0 0.0
      %166 = vmatprep.subr.mxu0 0.0
      %167 = vmatpush1.msra.mxu0 0.0
      %168 = vmatprep.subr.mxu0 0.0
      %169 = vmatpush1.msra.mxu0 0.0
      %170 = vmatprep.subr.mxu0 0.0
      %171 = vmatpush1.msra.mxu0 0.0
      %172 = vmatprep.subr.mxu0 0.0
      %173 = vmatpush1.msra.mxu0 0.0
      %174 = vmatprep.subr.mxu0 0.0
      %175 = vmatpush1.msra.mxu0 0.0
      %176 = vmatprep.subr.mxu0 0.0
      %177 = vmatpush1.msra.mxu0 0.0
      %178 = vmatprep.subr.mxu0 0.0
      %179 = vmatpush1.msra.mxu0 0.0
      %180 = vmatprep.subr.mxu0 0.0
      %181 = vmatpush1.msra.mxu0 0.0
      %182 = vmatprep.subr.mxu0 0.0
      %183 = vmatpush1.msra.mxu0 0.0
      %184 = vmatprep.subr.mxu0 0.0
      %185 = vmatpush1.msra.mxu0 0.0
      %186 = vmatprep.subr.mxu0 0.0
      %187 = vmatpush1.msra.mxu0 0.0
      %188 = vmatprep.subr.mxu0 0.0
      %189 = vmatpush1.msra.mxu0 0.0
      %190 = vmatprep.subr.mxu0 0.0
      %191 = vmatpush1.msra.mxu0 0.0
      %192 = vmatprep.subr.mxu0 0.0
      %193 = vmatpush1.msra.mxu0 0.0
      %194 = vmatprep.subr.mxu0 0.0
      %195 = vmatpush1.msra.mxu0 0.0
      %196 = vmatprep.subr.mxu0 0.0
      %197 = vmatpush1.msra.mxu0 0.0
      %198 = vmatprep.subr.mxu0 0.0
      %199 = vmatpush1.msra.mxu0 0.0
      %200 = vmatprep.subr.mxu0 0.0
      %201 = vmatpush1.msra.mxu0 0.0
      %202 = vmatprep.subr.mxu0 0.0
      %203 = vmatpush1.msra.mxu0 0.0
      %204 = vmatprep.subr.mxu0 0.0
      %205 = vmatpush1.msra.mxu0 0.0
      %206 = vmatprep.subr.mxu0 0.0
      %207 = vmatpush1.msra.mxu0 0.0
      %208 = vmatprep.subr.mxu0 0.0
      %209 = vmatpush1.msra.mxu0 0.0
      %210 = vmatprep.subr.mxu0 0.0
      %211 = vmatpush1.msra.mxu0 0.0
      %212 = vmatprep.subr.mxu0 0.0
      %213 = vmatpush1.msra.mxu0 0.0
      %214 = vmatprep.mubr.f32.mxu0 0.0
      %v215 = vand.u32 %v143, 4294901760
      %v216 = vsub.f32 %v143, %v215
      %v217 = vand.u32 %v216, 4294901760
      %v218 = vsub.f32 %v216, %v217
      %v219 = vand.u32 %v218, 4294901760
      %220 = vmatmul.mubr.f32.gmra.mrb[0].mxu0 %v219
      %v221 = vpop.f32.mrb[0].mxu0
      %v222 = vadd.f32 0.0, %v221
      %v223 = vpop.f32.mrb[0].mxu0
      %224 = vdwg.mxu0
      %225 = vmatprep.subr.mxu0 0.0
      %v226 = vand.u32 %v147, 4294901760
      %v227 = vsub.f32 %v147, %v226
      %v228 = vand.u32 %v227, 4294901760
      %v229 = vsub.f32 %v227, %v228
      %v230 = vand.u32 %v229, 4294901760
      %231 = vmatpush1.msra.mxu0 %v230
      %232 = vmatprep.subr.mxu0 0.0
      %233 = vmatpush1.msra.mxu0 0.0
      %234 = vmatprep.subr.mxu0 0.0
      %235 = vmatpush1.msra.mxu0 0.0
      %236 = vmatprep.subr.mxu0 0.0
      %237 = vmatpush1.msra.mxu0 0.0
      %238 = vmatprep.subr.mxu0 0.0
      %239 = vmatpush1.msra.mxu0 0.0
      %240 = vmatprep.subr.mxu0 0.0
      %241 = vmatpush1.msra.mxu0 0.0
      %242 = vmatprep.subr.mxu0 0.0
      %243 = vmatpush1.msra.mxu0 0.0
      %244 = vmatprep.subr.mxu0 0.0
      %245 = vmatpush1.msra.mxu0 0.0
      %246 = vmatprep.subr.mxu0 0.0
      %247 = vmatpush1.msra.mxu0 0.0
      %248 = vmatprep.subr.mxu0 0.0
      %249 = vmatpush1.msra.mxu0 0.0
      %250 = vmatprep.subr.mxu0 0.0
      %251 = vmatpush1.msra.mxu0 0.0
      %252 = vmatprep.subr.mxu0 0.0
      %253 = vmatpush1.msra.mxu0 0.0
      %254 = vmatprep.subr.mxu0 0.0
      %255 = vmatpush1.msra.mxu0 0.0
      %256 = vmatprep.subr.mxu0 0.0
      %257 = vmatpush1.msra.mxu0 0.0
      %258 = vmatprep.subr.mxu0 0.0
      %259 = vmatpush1.msra.mxu0 0.0
      %260 = vmatprep.subr.mxu0 0.0
      %261 = vmatpush1.msra.mxu0 0.0
      %262 = vmatprep.subr.mxu0 0.0
      %263 = vmatpush1.msra.mxu0 0.0
      %264 = vmatprep.subr.mxu0 0.0
      %265 = vmatpush1.msra.mxu0 0.0
      %266 = vmatprep.subr.mxu0 0.0
      %267 = vmatpush1.msra.mxu0 0.0
      %268 = vmatprep.subr.mxu0 0.0
      %269 = vmatpush1.msra.mxu0 0.0
      %270 = vmatprep.subr.mxu0 0.0
      %271 = vmatpush1.msra.mxu0 0.0
      %272 = vmatprep.subr.mxu0 0.0
      %273 = vmatpush1.msra.mxu0 0.0
      %274 = vmatprep.subr.mxu0 0.0
      %275 = vmatpush1.msra.mxu0 0.0
      %276 = vmatprep.subr.mxu0 0.0
      %277 = vmatpush1.msra.mxu0 0.0
      %278 = vmatprep.subr.mxu0 0.0
      %279 = vmatpush1.msra.mxu0 0.0
      %280 = vmatprep.subr.mxu0 0.0
      %281 = vmatpush1.msra.mxu0 0.0
      %282 = vmatprep.subr.mxu0 0.0
      %283 = vmatpush1.msra.mxu0 0.0
      %284 = vmatprep.subr.mxu0 0.0
      %285 = vmatpush1.msra.mxu0 0.0
      %286 = vmatprep.subr.mxu0 0.0
      %287 = vmatpush1.msra.mxu0 0.0
      %288 = vmatprep.subr.mxu0 0.0
      %289 = vmatpush1.msra.mxu0 0.0
      %290 = vmatprep.subr.mxu0 0.0
      %291 = vmatpush1.msra.mxu0 0.0
      %292 = vmatprep.subr.mxu0 0.0
      %293 = vmatpush1.msra.mxu0 0.0
      %294 = vmatprep.mubr.f32.mxu0 0.0
      %v295 = vand.u32 %v143, 4294901760
      %296 = vmatmul.mubr.f32.gmra.mrb[0].mxu0 %v295
      %v297 = vpop.f32.mrb[0].mxu0
      %v298 = vadd.f32 %v222, %v297
      %v299 = vpop.f32.mrb[0].mxu0
      %300 = vdwg.mxu0
      %301 = vmatprep.subr.mxu0 0.0
      %v302 = vand.u32 %v147, 4294901760
      %v303 = vsub.f32 %v147, %v302
      %304 = vmatpush1.msra.mxu0 %v303
      %305 = vmatprep.subr.mxu0 0.0
      %306 = vmatpush1.msra.mxu0 0.0
      %307 = vmatprep.subr.mxu0 0.0
      %308 = vmatpush1.msra.mxu0 0.0
      %309 = vmatprep.subr.mxu0 0.0
      %310 = vmatpush1.msra.mxu0 0.0
      %311 = vmatprep.subr.mxu0 0.0
      %312 = vmatpush1.msra.mxu0 0.0
      %313 = vmatprep.subr.mxu0 0.0
      %314 = vmatpush1.msra.mxu0 0.0
      %315 = vmatprep.subr.mxu0 0.0
      %316 = vmatpush1.msra.mxu0 0.0
      %317 = vmatprep.subr.mxu0 0.0
      %318 = vmatpush1.msra.mxu0 0.0
      %319 = vmatprep.subr.mxu0 0.0
      %320 = vmatpush1.msra.mxu0 0.0
      %321 = vmatprep.subr.mxu0 0.0
      %322 = vmatpush1.msra.mxu0 0.0
      %323 = vmatprep.subr.mxu0 0.0
      %324 = vmatpush1.msra.mxu0 0.0
      %325 = vmatprep.subr.mxu0 0.0
      %326 = vmatpush1.msra.mxu0 0.0
      %327 = vmatprep.subr.mxu0 0.0
      %328 = vmatpush1.msra.mxu0 0.0
      %329 = vmatprep.subr.mxu0 0.0
      %330 = vmatpush1.msra.mxu0 0.0
      %331 = vmatprep.subr.mxu0 0.0
      %332 = vmatpush1.msra.mxu0 0.0
      %333 = vmatprep.subr.mxu0 0.0
      %334 = vmatpush1.msra.mxu0 0.0
      %335 = vmatprep.subr.mxu0 0.0
      %336 = vmatpush1.msra.mxu0 0.0
      %337 = vmatprep.subr.mxu0 0.0
      %338 = vmatpush1.msra.mxu0 0.0
      %339 = vmatprep.subr.mxu0 0.0
      %340 = vmatpush1.msra.mxu0 0.0
      %341 = vmatprep.subr.mxu0 0.0
      %342 = vmatpush1.msra.mxu0 0.0
      %343 = vmatprep.subr.mxu0 0.0
      %344 = vmatpush1.msra.mxu0 0.0
      %345 = vmatprep.subr.mxu0 0.0
      %346 = vmatpush1.msra.mxu0 0.0
      %347 = vmatprep.subr.mxu0 0.0
      %348 = vmatpush1.msra.mxu0 0.0
      %349 = vmatprep.subr.mxu0 0.0
      %350 = vmatpush1.msra.mxu0 0.0
      %351 = vmatprep.subr.mxu0 0.0
      %352 = vmatpush1.msra.mxu0 0.0
      %353 = vmatprep.subr.mxu0 0.0
      %354 = vmatpush1.msra.mxu0 0.0
      %355 = vmatprep.subr.mxu0 0.0
      %356 = vmatpush1.msra.mxu0 0.0
      %357 = vmatprep.subr.mxu0 0.0
      %358 = vmatpush1.msra.mxu0 0.0
      %359 = vmatprep.subr.mxu0 0.0
      %360 = vmatpush1.msra.mxu0 0.0
      %361 = vmatprep.subr.mxu0 0.0
      %362 = vmatpush1.msra.mxu0 0.0
      %363 = vmatprep.subr.mxu0 0.0
      %364 = vmatpush1.msra.mxu0 0.0
      %365 = vmatprep.subr.mxu0 0.0
      %366 = vmatpush1.msra.mxu0 0.0
      %367 = vmatprep.mubr.f32.mxu0 0.0
      %v368 = vand.u32 %v143, 4294901760
      %v369 = vsub.f32 %v143, %v368
      %370 = vmatmul.mubr.f32.gmra.mrb[0].mxu0 %v369
      %v371 = vpop.f32.mrb[0].mxu0
      %v372 = vadd.f32 %v298, %v371
      %v373 = vpop.f32.mrb[0].mxu0
      %374 = vdwg.mxu0
      %375 = vmatprep.subr.mxu0 0.0
      %v376 = vand.u32 %v147, 4294901760
      %377 = vmatpush1.msra.mxu0 %v376
      %378 = vmatprep.subr.mxu0 0.0
      %379 = vmatpush1.msra.mxu0 0.0
      %380 = vmatprep.subr.mxu0 0.0
      %381 = vmatpush1.msra.mxu0 0.0
      %382 = vmatprep.subr.mxu0 0.0
      %383 = vmatpush1.msra.mxu0 0.0
      %384 = vmatprep.subr.mxu0 0.0
      %385 = vmatpush1.msra.mxu0 0.0
      %386 = vmatprep.subr.mxu0 0.0
      %387 = vmatpush1.msra.mxu0 0.0
      %388 = vmatprep.subr.mxu0 0.0
      %389 = vmatpush1.msra.mxu0 0.0
      %390 = vmatprep.subr.mxu0 0.0
      %391 = vmatpush1.msra.mxu0 0.0
      %392 = vmatprep.subr.mxu0 0.0
      %393 = vmatpush1.msra.mxu0 0.0
      %394 = vmatprep.subr.mxu0 0.0
      %395 = vmatpush1.msra.mxu0 0.0
      %396 = vmatprep.subr.mxu0 0.0
      %397 = vmatpush1.msra.mxu0 0.0
      %398 = vmatprep.subr.mxu0 0.0
      %399 = vmatpush1.msra.mxu0 0.0
      %400 = vmatprep.subr.mxu0 0.0
      %401 = vmatpush1.msra.mxu0 0.0
      %402 = vmatprep.subr.mxu0 0.0
      %403 = vmatpush1.msra.mxu0 0.0
      %404 = vmatprep.subr.mxu0 0.0
      %405 = vmatpush1.msra.mxu0 0.0
      %406 = vmatprep.subr.mxu0 0.0
      %407 = vmatpush1.msra.mxu0 0.0
      %408 = vmatprep.subr.mxu0 0.0
      %409 = vmatpush1.msra.mxu0 0.0
      %410 = vmatprep.subr.mxu0 0.0
      %411 = vmatpush1.msra.mxu0 0.0
      %412 = vmatprep.subr.mxu0 0.0
      %413 = vmatpush1.msra.mxu0 0.0
      %414 = vmatprep.subr.mxu0 0.0
      %415 = vmatpush1.msra.mxu0 0.0
      %416 = vmatprep.subr.mxu0 0.0
      %417 = vmatpush1.msra.mxu0 0.0
      %418 = vmatprep.subr.mxu0 0.0
      %419 = vmatpush1.msra.mxu0 0.0
      %420 = vmatprep.subr.mxu0 0.0
      %421 = vmatpush1.msra.mxu0 0.0
      %422 = vmatprep.subr.mxu0 0.0
      %423 = vmatpush1.msra.mxu0 0.0
      %424 = vmatprep.subr.mxu0 0.0
      %425 = vmatpush1.msra.mxu0 0.0
      %426 = vmatprep.subr.mxu0 0.0
      %427 = vmatpush1.msra.mxu0 0.0
      %428 = vmatprep.subr.mxu0 0.0
      %429 = vmatpush1.msra.mxu0 0.0
      %430 = vmatprep.subr.mxu0 0.0
      %431 = vmatpush1.msra.mxu0 0.0
      %432 = vmatprep.subr.mxu0 0.0
      %433 = vmatpush1.msra.mxu0 0.0
      %434 = vmatprep.subr.mxu0 0.0
      %435 = vmatpush1.msra.mxu0 0.0
      %436 = vmatprep.subr.mxu0 0.0
      %437 = vmatpush1.msra.mxu0 0.0
      %438 = vmatprep.subr.mxu0 0.0
      %439 = vmatpush1.msra.mxu0 0.0
      %440 = vmatprep.mubr.f32.mxu0 0.0
      %v441 = vand.u32 %v143, 4294901760
      %v442 = vsub.f32 %v143, %v441
      %v443 = vand.u32 %v442, 4294901760
      %444 = vmatmul.mubr.f32.gmra.mrb[0].mxu0 %v443
      %v445 = vpop.f32.mrb[0].mxu0
      %v446 = vadd.f32 %v372, %v445
      %v447 = vpop.f32.mrb[0].mxu0
      %448 = vdwg.mxu0
      %449 = vmatprep.subr.mxu0 0.0
      %v450 = vand.u32 %v147, 4294901760
      %v451 = vsub.f32 %v147, %v450
      %v452 = vand.u32 %v451, 4294901760
      %453 = vmatpush1.msra.mxu0 %v452
      %454 = vmatprep.subr.mxu0 0.0
      %455 = vmatpush1.msra.mxu0 0.0
      %456 = vmatprep.subr.mxu0 0.0
      %457 = vmatpush1.msra.mxu0 0.0
      %458 = vmatprep.subr.mxu0 0.0
      %459 = vmatpush1.msra.mxu0 0.0
      %460 = vmatprep.subr.mxu0 0.0
      %461 = vmatpush1.msra.mxu0 0.0
      %462 = vmatprep.subr.mxu0 0.0
      %463 = vmatpush1.msra.mxu0 0.0
      %464 = vmatprep.subr.mxu0 0.0
      %465 = vmatpush1.msra.mxu0 0.0
      %466 = vmatprep.subr.mxu0 0.0
      %467 = vmatpush1.msra.mxu0 0.0
      %468 = vmatprep.subr.mxu0 0.0
      %469 = vmatpush1.msra.mxu0 0.0
      %470 = vmatprep.subr.mxu0 0.0
      %471 = vmatpush1.msra.mxu0 0.0
      %472 = vmatprep.subr.mxu0 0.0
      %473 = vmatpush1.msra.mxu0 0.0
      %474 = vmatprep.subr.mxu0 0.0
      %475 = vmatpush1.msra.mxu0 0.0
      %476 = vmatprep.subr.mxu0 0.0
      %477 = vmatpush1.msra.mxu0 0.0
      %478 = vmatprep.subr.mxu0 0.0
      %479 = vmatpush1.msra.mxu0 0.0
      %480 = vmatprep.subr.mxu0 0.0
      %481 = vmatpush1.msra.mxu0 0.0
      %482 = vmatprep.subr.mxu0 0.0
      %483 = vmatpush1.msra.mxu0 0.0
      %484 = vmatprep.subr.mxu0 0.0
      %485 = vmatpush1.msra.mxu0 0.0
      %486 = vmatprep.subr.mxu0 0.0
      %487 = vmatpush1.msra.mxu0 0.0
      %488 = vmatprep.subr.mxu0 0.0
      %489 = vmatpush1.msra.mxu0 0.0
      %490 = vmatprep.subr.mxu0 0.0
      %491 = vmatpush1.msra.mxu0 0.0
      %492 = vmatprep.subr.mxu0 0.0
      %493 = vmatpush1.msra.mxu0 0.0
      %494 = vmatprep.subr.mxu0 0.0
      %495 = vmatpush1.msra.mxu0 0.0
      %496 = vmatprep.subr.mxu0 0.0
      %497 = vmatpush1.msra.mxu0 0.0
      %498 = vmatprep.subr.mxu0 0.0
      %499 = vmatpush1.msra.mxu0 0.0
      %500 = vmatprep.subr.mxu0 0.0
      %501 = vmatpush1.msra.mxu0 0.0
      %502 = vmatprep.subr.mxu0 0.0
      %503 = vmatpush1.msra.mxu0 0.0
      %504 = vmatprep.subr.mxu0 0.0
      %505 = vmatpush1.msra.mxu0 0.0
      %506 = vmatprep.subr.mxu0 0.0
      %507 = vmatpush1.msra.mxu0 0.0
      %508 = vmatprep.subr.mxu0 0.0
      %509 = vmatpush1.msra.mxu0 0.0
      %510 = vmatprep.subr.mxu0 0.0
      %511 = vmatpush1.msra.mxu0 0.0
      %512 = vmatprep.subr.mxu0 0.0
      %513 = vmatpush1.msra.mxu0 0.0
      %514 = vmatprep.subr.mxu0 0.0
      %515 = vmatpush1.msra.mxu0 0.0
      %516 = vmatprep.mubr.f32.mxu0 0.0
      %v517 = vand.u32 %v143, 4294901760
      %518 = vmatmul.mubr.f32.gmra.mrb[0].mxu0 %v517
      %v519 = vpop.f32.mrb[0].mxu0
      %v520 = vadd.f32 %v446, %v519
      %v521 = vpop.f32.mrb[0].mxu0
      %522 = vdwg.mxu0
      %523 = vmatprep.subr.mxu0 0.0
      %v524 = vand.u32 %v147, 4294901760
      %525 = vmatpush1.msra.mxu0 %v524
      %526 = vmatprep.subr.mxu0 0.0
      %527 = vmatpush1.msra.mxu0 0.0
      %528 = vmatprep.subr.mxu0 0.0
      %529 = vmatpush1.msra.mxu0 0.0
      %530 = vmatprep.subr.mxu0 0.0
      %531 = vmatpush1.msra.mxu0 0.0
      %532 = vmatprep.subr.mxu0 0.0
      %533 = vmatpush1.msra.mxu0 0.0
      %534 = vmatprep.subr.mxu0 0.0
      %535 = vmatpush1.msra.mxu0 0.0
      %536 = vmatprep.subr.mxu0 0.0
      %537 = vmatpush1.msra.mxu0 0.0
      %538 = vmatprep.subr.mxu0 0.0
      %539 = vmatpush1.msra.mxu0 0.0
      %540 = vmatprep.subr.mxu0 0.0
      %541 = vmatpush1.msra.mxu0 0.0
      %542 = vmatprep.subr.mxu0 0.0
      %543 = vmatpush1.msra.mxu0 0.0
      %544 = vmatprep.subr.mxu0 0.0
      %545 = vmatpush1.msra.mxu0 0.0
      %546 = vmatprep.subr.mxu0 0.0
      %547 = vmatpush1.msra.mxu0 0.0
      %548 = vmatprep.subr.mxu0 0.0
      %549 = vmatpush1.msra.mxu0 0.0
      %550 = vmatprep.subr.mxu0 0.0
      %551 = vmatpush1.msra.mxu0 0.0
      %552 = vmatprep.subr.mxu0 0.0
      %553 = vmatpush1.msra.mxu0 0.0
      %554 = vmatprep.subr.mxu0 0.0
      %555 = vmatpush1.msra.mxu0 0.0
      %556 = vmatprep.subr.mxu0 0.0
      %557 = vmatpush1.msra.mxu0 0.0
      %558 = vmatprep.subr.mxu0 0.0
      %559 = vmatpush1.msra.mxu0 0.0
      %560 = vmatprep.subr.mxu0 0.0
      %561 = vmatpush1.msra.mxu0 0.0
      %562 = vmatprep.subr.mxu0 0.0
      %563 = vmatpush1.msra.mxu0 0.0
      %564 = vmatprep.subr.mxu0 0.0
      %565 = vmatpush1.msra.mxu0 0.0
      %566 = vmatprep.subr.mxu0 0.0
      %567 = vmatpush1.msra.mxu0 0.0
      %568 = vmatprep.subr.mxu0 0.0
      %569 = vmatpush1.msra.mxu0 0.0
      %570 = vmatprep.subr.mxu0 0.0
      %571 = vmatpush1.msra.mxu0 0.0
      %572 = vmatprep.subr.mxu0 0.0
      %573 = vmatpush1.msra.mxu0 0.0
      %574 = vmatprep.subr.mxu0 0.0
      %575 = vmatpush1.msra.mxu0 0.0
      %576 = vmatprep.subr.mxu0 0.0
      %577 = vmatpush1.msra.mxu0 0.0
      %578 = vmatprep.subr.mxu0 0.0
      %579 = vmatpush1.msra.mxu0 0.0
      %580 = vmatprep.subr.mxu0 0.0
      %581 = vmatpush1.msra.mxu0 0.0
      %582 = vmatprep.subr.mxu0 0.0
      %583 = vmatpush1.msra.mxu0 0.0
      %584 = vmatprep.subr.mxu0 0.0
      %585 = vmatpush1.msra.mxu0 0.0
      %586 = vmatprep.subr.mxu0 0.0
      %587 = vmatpush1.msra.mxu0 0.0
      %588 = vmatprep.mubr.f32.mxu0 0.0
      %v589 = vand.u32 %v143, 4294901760
      %590 = vmatmul.mubr.f32.gmra.mrb[0].mxu0 %v589
      %v591 = vpop.f32.mrb[0].mxu0
      %v592 = vadd.f32 %v520, %v591
      %v593 = vpop.f32.mrb[0].mxu0
      %594 = vdwg.mxu0
      %v595 = vand.u32 2147483647, %v592
      %vm596 = vcmp.le.f32.partialorder %v595, 0.7853982
      %vm597 = vcmp.lt.s32.totalorder %v592, 0
      %v598 = vand.u32 %v592, 2139095040
      %v599 = vshrl.u32 %v598, 23
      %v600 = vsub.s32 %v599, 127
      %v601 = vand.u32 2147483647, %v592
      %v602 = vand.u32 %v601, 8388607
      %v603 = vor.u32 %v602, 8388608
      %v604 = vsub.s32 0, %v603
      %v605 = vadd.s32 %v600, 1
      %vm606 = vcmp.gt.s32.totalorder %v605, 0
      %v607 = vsel %vm606, %v605, 0
      %v608 = vshrl.u32 %v607, 5
      %v609 = vand.u32 %v607, 31
      %v610 = vsub.s32 32, %v609
      %v611 = vshrl.u32 683565275, %v610
      %v612 = vshll.u32 683565275, %v609
      %v613 = vshrl.u32 2475754826, %v610
      %v614 = vor.u32 %v612, %v613
      %v615 = vshll.u32 2475754826, %v609
      %v616 = vshrl.u32 2131351028, %v610
      %v617 = vor.u32 %v615, %v616
      %v618 = vshll.u32 2131351028, %v609
      %v619 = vshrl.u32 2102212464, %v610
      %v620 = vor.u32 %v618, %v619
      %v621 = vshll.u32 2102212464, %v609
      %v622 = vshrl.u32 920167782, %v610
      %v623 = vor.u32 %v621, %v622
      %v624 = vshll.u32 920167782, %v609
      %v625 = vshrl.u32 1326507024, %v610
      %v626 = vor.u32 %v624, %v625
      %vm627 = vcmp.lt.s32.totalorder %v608, 1
      %vm628 = vcmp.lt.s32.totalorder %v608, 2
      %vm629 = vcmp.lt.s32.totalorder %v608, 3
      %vm630 = vcmp.lt.s32.totalorder %v608, 4
      %v631 = vsel %vm627, %v611, %v614
      %v632 = vsel %vm630, %v620, 2102212464
      %v633 = vsel %vm629, %v617, %v632
      %v634 = vsel %vm628, %v631, %v633
      %v635 = vsel %vm627, %v614, %v617
      %v636 = vsel %vm630, %v623, 920167782
      %v637 = vsel %vm629, %v620, %v636
      %v638 = vsel %vm628, %v635, %v637
      %v639 = vsel %vm627, %v617, %v620
      %v640 = vsel %vm630, %v626, 1326507024
      %v641 = vsel %vm629, %v623, %v640
      %v642 = vsel %vm628, %v639, %v641
      %v643 = vshll.u32 %v603, 8
      %v644 = vmul.u32.u64.compose %v643, %v642
      %v645 = vextract.low.u32 %v644
      %v646 = vextract.high.u32 %v644
      %v647 = vmul.u32.u64.compose %v643, %v638
      %v648 = vextract.low.u32 %v647
      %v649 = vextract.high.u32 %v647
      %v650 = vmul.u32 %v643, %v634
      %v651 = vadd.s32 %v646, %v648
      %vm652 = vc.u32 %v646, %v648
      %v653 = vadd.s32 %v649, 1
      %v654 = vsel %vm652, %v653, %v649
      %v655 = vadd.s32 %v650, %v654
      %v656 = vadd.s32 %v655, 536870912
      %v657 = vshrl.u32 %v656, 30
      %v658 = vshll.u32 %v657, 30
      %v659 = vsub.s32 %v655, %v658
      %vm660 = vcmp.lt.s32.totalorder %v659, 0
      %v661 = vsub.s32 0, %v659
      %v662 = vsel %vm660, %v661, %v659
      %v663 = vclz %v662
      %v664 = vsub.s32 %v663, 2
      %vm665 = vcmp.gt.s32.totalorder 0, %v664
      %v666 = vsel %vm665, 0, %v664
      %v667 = vsub.s32 32, %v666
      %v668 = vshll.u32 %v659, %v666
      %v669 = vshrl.u32 %v651, %v667
      %v670 = vor.u32 %v668, %v669
      %v671 = vsub.s32 4294967266, %v666
      %v672 = vadd.s32 %v671, 127
      %v673 = vshll.u32 %v672, 23
      %v674 = vor.u32 4788187, %v673
      %v675 = vand.u32 2147483647, %v674
      %v677 = vcvt.s32.f32 %v670
      %v678 = vmul.f32 %v677, %v675
      %v679 = vxor.u32 %v678, 2147483648
      %v680 = vsel %vm597, %v679, %v678
      %v681 = vsub.s32 4, %v657
      %v682 = vsel %vm597, %v681, %v657
      %v683 = vsel %vm596, %v592, %v680
      %v684 = vsel %vm596, 0, %v682
      %v685 = vcosq.f32.pop %v683
      %v686 = vsinq.f32.pop %v683
      %vm687 = vweird.f32 %v592
      %v688 = vand.u32 %v684, 3
      %vm689 = vcmp.lt.s32.totalorder %v688, 2
      %vm690 = vcmp.eq.s32.totalorder %v688, 0
      %v691 = vxor.u32 %v686, 2147483648
      %v692 = vsel %vm690, %v685, %v691
      %vm693 = vcmp.eq.s32.totalorder %v688, 2
      %v694 = vxor.u32 %v685, 2147483648
      %v695 = vsel %vm693, %v694, %v686
      %v696 = vsel %vm689, %v692, %v695
      %v697 = vsel %vm687, nan, %v696
      %698 = vst [vmem:[%s138] sm:$0xff] %v697
      %p699 = scmp.lt.s32.totalorder %s13, 3
      %s700 = scalar_select %p699, %s13, 3
      %s701 = smul.addr %s700, 8
      %s702 = scalar_lea.vmem %s2, %s701
      // Predicated region
      $region29: #{time_encoder.1} parent=27 // pred_check
        %p703 = pneg %p78
      $region30: #{time_encoder.1} parent=27 // pred_check_branch
        %705 = sbr.rel (%p703) target = $region32
      $region31: #{time_encoder.1} parent=27 // pred_region
        _
      $region32: #{time_encoder.1} parent=27 // pred_fallthru
        _
    $region28: #{time_encoder.1} parent=5 // pred_fallthru
      _
    %p706 = scmp.le.s32.totalorder 2, %s8
    // Predicated region
    $region33: #{time_encoder.1} parent=5 // pred_check
      %p707 = pneg %p706
    $region34: #{time_encoder.1} parent=5 // pred_check_branch
      %709 = sbr.rel (%p707) target = $region36
    $region35: #{time_encoder.1} parent=5 // pred_region
      %s710 = ssub.s32 %s8, 2
      // Predicated region
      $region37: #{time_encoder.1} parent=35 // pred_check
        %p711 = pneg %p84
      $region38: #{time_encoder.1} parent=35 // pred_check_branch
        %713 = sbr.rel (%p711) target = $region40
      $region39: #{time_encoder.1} parent=35 // pred_region
        %p714 = scmp.lt.s32.totalorder %s14, 3
        %s715 = scalar_select %p714, %s14, 3
        %s716 = smul.addr %s715, 8
        %s717 = scalar_lea.vmem %s2, %s716
      $region40: #{time_encoder.1} parent=35 // pred_fallthru
        _
    $region36: #{time_encoder.1} parent=5 // pred_fallthru
      _
  $region6: #{time_encoder.1} parent=0 // loop_footer
    %s12 = sadd.s32 1, %s8
  $region7: #{time_encoder.1} parent=0 // loop_footer_branch
    %7 = sbr.rel target = $region3
  $region8: #{time_encoder.1} parent=0 // loop_exit
    _

</llo_original>
